<compile_context>
chip_gen: v6e
topology: v6e:2x2x1
jax: 0.10.0
libtpu: 0.0.40
codegen_flags: <defaults>
</compile_context>

<pallas_src>
import functools

import jax
import jax.numpy as jnp
from jax.experimental import pallas as pl
from jax.experimental.pallas import tpu as pltpu

SHAPE_DIM = 40
EXP_DIM = 10
BASIS_DIM = SHAPE_DIM + EXP_DIM          # 50
AUG_DIM = 160                            # 150 basis rows + 3 u rows + 7 zero pad rows


def _bfm_kernel(c_ref, r_ref, off_ref, w_ref, out_ref):
    # c_ref  : (3B, AUG_DIM)  bf16  per-batch [blockdiag(alpha) | I3 | 0]
    # r_ref  : (3B, 3B)       f32   block-diagonal rotations (kept in f32)
    # off_ref: (3B, 1)        f32   translations
    # w_ref  : (AUG_DIM, tn)  bf16  basis slab tile (the only real HBM traffic)
    # out_ref: (3B, tn)       f32
    acc = jnp.dot(c_ref[...], w_ref[...],
                  preferred_element_type=jnp.float32)          # u + W @ alpha
    out_ref[...] = jnp.dot(r_ref[...], acc,
                           preferred_element_type=jnp.float32) + off_ref[...]


def prepare_basis(u_flat, w_shp, w_exp, *, tn, dtype=jnp.bfloat16):
    """Replicates the BFMModel_ONNX.__init__ tensor transforms and packs the
    mean shape + shape/expression basis into a single (AUG_DIM, N_pad) slab
    laid out for the kernel (done once at load time, not per call)."""
    n = u_flat.shape[0] // 3
    u = u_flat.reshape(-1, 3).T                                              # (3, N)
    w_cat = jnp.concatenate([w_shp[:, :SHAPE_DIM], w_exp[:, :EXP_DIM]], 1)   # (3N, 50)
    w = jnp.transpose(w_cat.reshape(-1, 3, BASIS_DIM), (1, 0, 2))            # (3, N, 50)
    w_flat = jnp.transpose(w, (0, 2, 1)).reshape(3 * BASIS_DIM, n)           # (150, N)
    pad_rows = AUG_DIM - 3 * BASIS_DIM - 3
    slab = jnp.concatenate(
        [w_flat, u, jnp.zeros((pad_rows, n), jnp.float32)], axis=0)          # (160, N)
    n_pad = pl.cdiv(n, tn) * tn
    if n_pad != n:
        slab = jnp.pad(slab, ((0, 0), (0, n_pad - n)))
    # TODO(synk): on v7x an fp8(e4m3) slab with per-row scales folded into the
    # matching C columns would halve the remaining HBM traffic; needs accuracy
    # validation on the real BFM basis before enabling.
    return slab.astype(dtype), n


def _bfm_forward_impl(Rs, offsets, alpha_shps, alpha_exps, basis, n_vertices, tn):
    aug, n_pad = basis.shape
    assert aug == AUG_DIM
    assert tn % 128 == 0, "vertex tile must be lane-aligned"
    grid_n = pl.cdiv(n_vertices, tn)
    assert n_pad >= grid_n * tn, "basis slab not padded for this tile size"

    b = Rs.shape[0]
    rows = 3 * b
    f32 = jnp.float32

    # Fold per-batch alpha into the bf16 coefficient matrix (alpha only; R and
    # offset stay in f32 and are applied in the kernel epilogue).
    alpha = jnp.concatenate([alpha_shps, alpha_exps], axis=1)[..., 0]        # (B, 50)
    eye3 = jnp.eye(3, dtype=f32)
    blockdiag = jnp.einsum('ij,bk->bijk', eye3, alpha.astype(f32))
    blockdiag = blockdiag.reshape(b, 3, 3 * BASIS_DIM)                       # (B,3,150)
    eye_rows = jnp.broadcast_to(eye3, (b, 3, 3))                             # (B,3,3)
    pad_cols = AUG_DIM - 3 * BASIS_DIM - 3
    c_aug = jnp.concatenate(
        [blockdiag, eye_rows, jnp.zeros((b, 3, pad_cols), f32)], axis=2)
    c_aug = c_aug.reshape(rows, AUG_DIM).astype(basis.dtype)                 # (3B,160)

    # Block-diagonal rotation (f32) and stacked offsets (f32).
    r_blk = (jnp.eye(b, dtype=f32)[:, None, :, None]
             * Rs.astype(f32)[:, :, None, :]).reshape(rows, rows)            # (3B,3B)
    off = offsets.astype(f32).reshape(rows, 1)                               # (3B,1)

    itemsize = jnp.dtype(basis.dtype).itemsize
    cols = grid_n * tn
    cost = pl.CostEstimate(
        flops=2 * rows * AUG_DIM * cols + 2 * rows * rows * cols,
        transcendentals=0,
        bytes_accessed=(AUG_DIM * cols * itemsize            # slab stream (dominant)
                        + rows * n_vertices * 4              # f32 output
                        + rows * (AUG_DIM * itemsize + rows * 4 + 4)),
    )
    vmem_bytes = (2 * AUG_DIM * tn * itemsize                # double-buffered slab tile
                  + 2 * rows * tn * 4                        # double-buffered out tile
                  + rows * (AUG_DIM + rows + 1) * 8
                  + (2 << 20))                               # headroom
    vmem_bytes = max(int(vmem_bytes), 32 * 1024 * 1024)

    out = pl.pallas_call(
        _bfm_kernel,
        out_shape=jax.ShapeDtypeStruct((rows, n_vertices), f32),
        grid=(grid_n,),
        in_specs=[
            pl.BlockSpec((rows, AUG_DIM), lambda i: (0, 0)),   # folded alpha coeffs
            pl.BlockSpec((rows, rows), lambda i: (0, 0)),      # block-diag R (f32)
            pl.BlockSpec((rows, 1), lambda i: (0, 0)),         # offsets (f32)
            pl.BlockSpec((AUG_DIM, tn), lambda i: (0, i)),     # basis slab tile
        ],
        out_specs=pl.BlockSpec((rows, tn), lambda i: (0, i)),
        compiler_params=pltpu.CompilerParams(
            dimension_semantics=("parallel",),                 # megacore / v7x 2-TC split
            vmem_limit_bytes=vmem_bytes),
        cost_estimate=cost,
    )(c_aug, r_blk, off, basis)
    return out.reshape(b, 3, n_vertices)


@functools.partial(jax.jit, static_argnames=("n_vertices", "tn"))
def bfm_forward_batched(Rs, offsets, alpha_shps, alpha_exps, basis, *,
                        n_vertices, tn=16384):
    """B parameter sets against one shared basis stream -> (B, 3, n_vertices)."""
    return _bfm_forward_impl(Rs, offsets, alpha_shps, alpha_exps, basis,
                             n_vertices, tn)


@functools.partial(jax.jit, static_argnames=("n_vertices", "tn"))
def bfm_forward(R, offset, alpha_shp, alpha_exp, basis, *, n_vertices, tn=16384):
    """Single parameter set — matches BFMModel_ONNX.forward -> (3, n_vertices)."""
    out = _bfm_forward_impl(R[None], offset[None], alpha_shp[None],
                            alpha_exp[None], basis, n_vertices, tn)
    return out[0]


def make_raw_bfm(key, n_vertices):
    """Deterministic synthetic stand-in for the pickled BFM file contents."""
    k_u, k_shp, k_exp = jax.random.split(key, 3)
    u_flat = jax.random.normal(k_u, (n_vertices * 3,), dtype=jnp.float32)
    w_shp = jax.random.normal(k_shp, (n_vertices * 3, SHAPE_DIM), dtype=jnp.float32) * 0.1
    w_exp = jax.random.normal(k_exp, (n_vertices * 3, EXP_DIM), dtype=jnp.float32) * 0.1
    return u_flat, w_shp, w_exp


def reference_forward(R, offset, alpha_shp, alpha_exp, u_flat, w_shp, w_exp):
    """Pure-JAX f32 reference following the PyTorch module exactly."""
    u = u_flat.reshape(-1, 3).T                                              # (3, N)
    w_cat = jnp.concatenate([w_shp[:, :SHAPE_DIM], w_exp[:, :EXP_DIM]], 1)   # (3N, 50)
    w = jnp.transpose(w_cat.reshape(-1, 3, BASIS_DIM), (1, 0, 2))            # (3, N, 50)
    alpha = jnp.concatenate([alpha_shp, alpha_exp], axis=0)                  # (50, 1)
    wa = jnp.matmul(w, alpha)[..., 0]                                        # (3, N)
    return R @ (u + wa) + offset


if __name__ == "__main__":
    # TODO(synk): the real BFM loads ~38k-53k vertices from a pickle; a small
    # deterministic synthetic basis is built in-script instead.
    N = 2500      # not tile-aligned -> exercises slab padding + masked last tile
    TN = 1024     # small demo tile; production default is tn=16384

    key = jax.random.PRNGKey(0)
    k_bfm, k_R, k_off, k_as, k_ae, k_batch = jax.random.split(key, 6)
    u_flat, w_shp, w_exp = make_raw_bfm(k_bfm, N)

    R = jax.random.normal(k_R, (3, 3), dtype=jnp.float32)
    offset = jax.random.normal(k_off, (3, 1), dtype=jnp.float32)
    alpha_shp = jax.random.normal(k_as, (SHAPE_DIM, 1), dtype=jnp.float32)
    alpha_exp = jax.random.normal(k_ae, (EXP_DIM, 1), dtype=jnp.float32)

    # bf16 basis slab (halves the dominant HBM read); f32 R/offset/accumulation.
    basis, n = prepare_basis(u_flat, w_shp, w_exp, tn=TN, dtype=jnp.bfloat16)

    # --- single parameter set (module semantics) ---
    ref = reference_forward(R, offset, alpha_shp, alpha_exp, u_flat, w_shp, w_exp)
    pts3d = bfm_forward(R, offset, alpha_shp, alpha_exp, basis,
                        n_vertices=n, tn=TN)
    pts3d = jax.block_until_ready(pts3d)
    assert pts3d.shape == (3, N)
    rel_err = float(jnp.max(jnp.abs(pts3d - ref)) / (jnp.max(jnp.abs(ref)) + 1e-6))
    assert rel_err < 1.5e-2, f"single-set mismatch vs reference (rel_err={rel_err})"

    # --- batched parameter sets sharing one basis stream (biggest perf lever) ---
    B = 2
    kb_R, kb_off, kb_s, kb_e = jax.random.split(k_batch, 4)
    Rs = jax.random.normal(kb_R, (B, 3, 3), dtype=jnp.float32)
    offs = jax.random.normal(kb_off, (B, 3, 1), dtype=jnp.float32)
    a_shp = jax.random.normal(kb_s, (B, SHAPE_DIM, 1), dtype=jnp.float32)
    a_exp = jax.random.normal(kb_e, (B, EXP_DIM, 1), dtype=jnp.float32)
    out_b = bfm_forward_batched(Rs, offs, a_shp, a_exp, basis,
                                n_vertices=n, tn=TN)
    out_b = jax.block_until_ready(out_b)
    assert out_b.shape == (B, 3, N)
    ref_b = jnp.stack([reference_forward(Rs[i], offs[i], a_shp[i], a_exp[i],
                                         u_flat, w_shp, w_exp) for i in range(B)])
    rel_b = float(jnp.max(jnp.abs(out_b - ref_b)) / (jnp.max(jnp.abs(ref_b)) + 1e-6))
    assert rel_b < 1.5e-2, f"batched mismatch vs reference (rel_err={rel_b})"

    print("KERNEL_OK")
</pallas_src>

<mosaic_0001>
module attributes {stable_mosaic.version = 11 : i64} {
  func.func @_bfm_kernel(%arg0: i32, %arg1: memref<3x160xbf16, #tpu.memory_space<vmem>>, %arg2: memref<3x3xf32, #tpu.memory_space<vmem>>, %arg3: memref<3x1xf32, #tpu.memory_space<vmem>>, %arg4: memref<160x1024xbf16, #tpu.memory_space<vmem>>, %arg5: memref<3x1024xf32, #tpu.memory_space<vmem>>) attributes {dimension_semantics = [#tpu.dimension_semantics<parallel>], iteration_bounds = array<i64: 3>, scalar_prefetch = 0 : i64, scratch_operands = 0 : i64, tpu.core_type = #tpu.core_type<tc>, window_params = [{pipeline_mode = #tpu.pipeline_mode<synchronous>, transform_indices = @transform_0, window_bounds = array<i64: 3, 160>}, {pipeline_mode = #tpu.pipeline_mode<synchronous>, transform_indices = @transform_1, window_bounds = array<i64: 3, 3>}, {pipeline_mode = #tpu.pipeline_mode<synchronous>, transform_indices = @transform_2, window_bounds = array<i64: 3, 1>}, {transform_indices = @transform_3, window_bounds = array<i64: 160, 1024>}, {transform_indices = @transform_4, window_bounds = array<i64: 3, 1024>}]} {
    %c0 = arith.constant 0 : index
    %c0_0 = arith.constant 0 : index
    %0 = vector.load %arg1[%c0, %c0_0] : memref<3x160xbf16, #tpu.memory_space<vmem>>, vector<3x160xbf16>
    %c0_1 = arith.constant 0 : index
    %c0_2 = arith.constant 0 : index
    %1 = vector.load %arg4[%c0_1, %c0_2] : memref<160x1024xbf16, #tpu.memory_space<vmem>>, vector<160x1024xbf16>
    %cst = arith.constant dense<0.000000e+00> : vector<3x1024xf32>
    %2 = tpu.matmul %0, %1, %cst {dimension_numbers = #tpu.dot_dimension_numbers<[1], [0], [0], [1], [0, 0, 1, 1], [], []>} : vector<3x160xbf16>, vector<160x1024xbf16>, vector<3x1024xf32> -> vector<3x1024xf32>
    %c0_3 = arith.constant 0 : index
    %c0_4 = arith.constant 0 : index
    %3 = vector.load %arg2[%c0_3, %c0_4] : memref<3x3xf32, #tpu.memory_space<vmem>>, vector<3x3xf32>
    %cst_5 = arith.constant dense<0.000000e+00> : vector<3x1024xf32>
    %4 = tpu.matmul %3, %2, %cst_5 {dimension_numbers = #tpu.dot_dimension_numbers<[1], [0], [0], [1], [0, 0, 1, 1], [], []>} : vector<3x3xf32>, vector<3x1024xf32>, vector<3x1024xf32> -> vector<3x1024xf32>
    %c0_6 = arith.constant 0 : index
    %c0_7 = arith.constant 0 : index
    %5 = vector.load %arg3[%c0_6, %c0_7] : memref<3x1xf32, #tpu.memory_space<vmem>>, vector<3x1xf32>
    %6 = vector.broadcast %5 : vector<3x1xf32> to vector<3x1024xf32>
    %7 = arith.addf %4, %6 : vector<3x1024xf32>
    %c0_8 = arith.constant 0 : index
    %c0_9 = arith.constant 0 : index
    %8 = vector.load %arg5[%c0_8, %c0_9] : memref<3x1024xf32, #tpu.memory_space<vmem>>, vector<3x1024xf32>
    tpu.vector_store %arg5[%c0_8, %c0_9], %7 {strides = array<i32>} : memref<3x1024xf32, #tpu.memory_space<vmem>>, vector<3x1024xf32>,
    return
  }
  func.func @transform_0(%arg0: i32) -> (i32, i32) {
    %c0_i32 = arith.constant 0 : i32
    %c0_i32_0 = arith.constant 0 : i32
    %c0_i32_1 = arith.constant 0 : i32
    return %c0_i32, %c0_i32_0 : i32, i32
  }
  func.func @transform_1(%arg0: i32) -> (i32, i32) {
    %c0_i32 = arith.constant 0 : i32
    %c0_i32_0 = arith.constant 0 : i32
    %c0_i32_1 = arith.constant 0 : i32
    return %c0_i32, %c0_i32_0 : i32, i32
  }
  func.func @transform_2(%arg0: i32) -> (i32, i32) {
    %c0_i32 = arith.constant 0 : i32
    %c0_i32_0 = arith.constant 0 : i32
    %c0_i32_1 = arith.constant 0 : i32
    return %c0_i32, %c0_i32_0 : i32, i32
  }
  func.func @transform_3(%arg0: i32) -> (i32, i32) {
    %c0_i32 = arith.constant 0 : i32
    %c0_i32_0 = arith.constant 0 : i32
    return %c0_i32, %arg0 : i32, i32
  }
  func.func @transform_4(%arg0: i32) -> (i32, i32) {
    %c0_i32 = arith.constant 0 : i32
    %c0_i32_0 = arith.constant 0 : i32
    return %c0_i32, %arg0 : i32, i32
  }
}

</mosaic_0001>

<llo_original>
// kernel: bfm_forward.1
$region0: #{bfm_forward.1}
  #allocation0 [shape = 'u32[]', space=smem, size = 0x4, offset = 0x4, fixed_abs, tag = 'smem constant byte address 0x4 - core index']
  #allocation1 [shape = 'u32[144,128]{1,0:T(1,128)}', space=vmem, size = 0x12000, scoped, tag = 'internal scratch']
  %s0 = inlined_call_operand.vmem [shape: bf16[3,160], index: 0, kind: input, shape index: {}]
  %s1 = inlined_call_operand.vmem [shape: f32[3,3], index: 1, kind: input, shape index: {}]
  %s2 = inlined_call_operand.vmem [shape: f32[3,1], index: 2, kind: input, shape index: {}]
  %s3 = inlined_call_operand.hbm [shape: bf16[160,3072], index: 3, kind: input, shape index: {}]
  %s4 = inlined_call_operand.hbm [shape: f32[3,2500], index: 4, kind: output, shape index: {}]
  %s5 = sld [smem:[#allocation0]]
  $region53: #{bfm_forward.1} parent=0
    _
  %s7 = ssub.s32 1, %s5
  %s8 = scalar_select 0, %s7, %s5
  $region1: #{bfm_forward.1} parent=0
    #allocation2 [shape = 'u8[655360]{0}', space=vmem, size = 0xa0000, scoped, tag = 'input window, operand 3']
    #allocation3 [shape = 's32[2]{0}', space=sflag, size = 0x8, scoped, tag = 'scoped memory for bfm_forward.1']
    #allocation4 [shape = 's32[2]{0}', space=sflag, size = 0x8, scoped, tag = 'scoped memory for bfm_forward.1']
    #allocation5 [shape = 'u8[32768]{0}', space=vmem, size = 0x8000, scoped, tag = 'output window, operand 0']
    %9 = vsyncpa [#allocation3], 0
    %s10 = scalar_lea.sflag [#allocation3], 1
    %11 = vsyncpa %s10, 0
    %12 = vsyncpa [#allocation4], 0
    %s13 = scalar_lea.sflag [#allocation4], 1
    %14 = vsyncpa %s13, 0
    loop: start=0, step=1, limit=5
    $region2: #{bfm_forward.1} parent=1 // loop_pre_header
      _
    $region3: #{bfm_forward.1} parent=1 // loop_header
      %s16 = sphi 0, %s20
      %p17 = scmp.ge.s32.totalorder %s16, 5
      %s24 = sphi 0, %s24
      %s26 = sphi 0, %s24
      %s27 = sphi 0, %s26
      %s41 = sphi 0, %s27
      %s45 = sphi 0, %s45
      %s47 = sphi 0, %s45
      %s48 = sphi 0, %s47
      %s62 = sphi 0, %s48
      %s66 = sphi 0, %s66
      %s68 = sphi 0, %s66
      %s69 = sphi 0, %s68
      %s83 = sphi 0, %s69
      %s89 = sphi 0, %s91
      %s92 = sphi 0, %s89
      %s93 = sphi 0, %s92
      %s109 = sphi 0, %s93
      %s115 = sphi 0, %s117
      %s118 = sphi 0, %s115
      %s119 = sphi 0, %s118
      %s135 = sphi 0, %s119
    $region4: #{bfm_forward.1} parent=1 // loop_header_branch
      %19 = sbr.rel (%p17) target = $region8
    $region5: #{bfm_forward.1} parent=1 // loop_body
      %s21 = ssub.s32 %s16, 1
      %s22 = ssub.s32 %s16, 2
      %s23 = sadd.s32 %s16, 1
      %s25 = sadd.s32 %s24, 1
      %p28 = scmp.eq.s32.totalorder %s16, 2
      %p29 = scmp.ne.s32.totalorder %s24, %s26
      %p30 = scmp.eq.s32.totalorder %s16, 0
      %p31 = por %p29, %p30
      %p32 = scmp.ne.s32.totalorder %s24, %s26
      %p33 = scmp.eq.s32.totalorder %s21, 2
      %p34 = por %p32, %p33
      %p35 = scmp.ne.s32.totalorder %s26, %s27
      %p36 = scmp.eq.s32.totalorder %s21, 0
      %p37 = por %p35, %p36
      %p38 = scmp.ne.s32.totalorder %s26, %s27
      %p39 = scmp.eq.s32.totalorder %s22, 2
      %p40 = por %p38, %p39
      %p42 = scmp.ne.s32.totalorder %s27, %s41
      %p43 = scmp.eq.s32.totalorder %s22, 0
      %p44 = por %p42, %p43
      %s46 = sadd.s32 %s45, 1
      %p49 = scmp.eq.s32.totalorder %s16, 2
      %p50 = scmp.ne.s32.totalorder %s45, %s47
      %p51 = scmp.eq.s32.totalorder %s16, 0
      %p52 = por %p50, %p51
      %p53 = scmp.ne.s32.totalorder %s45, %s47
      %p54 = scmp.eq.s32.totalorder %s21, 2
      %p55 = por %p53, %p54
      %p56 = scmp.ne.s32.totalorder %s47, %s48
      %p57 = scmp.eq.s32.totalorder %s21, 0
      %p58 = por %p56, %p57
      %p59 = scmp.ne.s32.totalorder %s47, %s48
      %p60 = scmp.eq.s32.totalorder %s22, 2
      %p61 = por %p59, %p60
      %p63 = scmp.ne.s32.totalorder %s48, %s62
      %p64 = scmp.eq.s32.totalorder %s22, 0
      %p65 = por %p63, %p64
      %s67 = sadd.s32 %s66, 1
      %p70 = scmp.eq.s32.totalorder %s16, 2
      %p71 = scmp.ne.s32.totalorder %s66, %s68
      %p72 = scmp.eq.s32.totalorder %s16, 0
      %p73 = por %p71, %p72
      %p74 = scmp.ne.s32.totalorder %s66, %s68
      %p75 = scmp.eq.s32.totalorder %s21, 2
      %p76 = por %p74, %p75
      %p77 = scmp.ne.s32.totalorder %s68, %s69
      %p78 = scmp.eq.s32.totalorder %s21, 0
      %p79 = por %p77, %p78
      %p80 = scmp.ne.s32.totalorder %s68, %s69
      %p81 = scmp.eq.s32.totalorder %s22, 2
      %p82 = por %p80, %p81
      %p84 = scmp.ne.s32.totalorder %s69, %s83
      %p85 = scmp.eq.s32.totalorder %s22, 0
      %p86 = por %p84, %p85
      %s87 = ssub.s32 %s16, %s23
      %p88 = scmp.eq.s32.totalorder %s87, 0
      %s90 = sadd.s32 %s89, 1
      %s91 = scalar_select %p88, %s89, %s90
      %p94 = pneg %p88
      %p95 = scmp.eq.s32.totalorder %s16, 2
      %p96 = por %p94, %p95
      %p97 = scmp.ne.s32.totalorder %s89, %s92
      %p98 = scmp.eq.s32.totalorder %s16, 0
      %p99 = por %p97, %p98
      %p100 = scmp.ne.s32.totalorder %s89, %s92
      %p101 = scmp.eq.s32.totalorder %s21, 2
      %p102 = por %p100, %p101
      %p103 = scmp.ne.s32.totalorder %s92, %s93
      %p104 = scmp.eq.s32.totalorder %s21, 0
      %p105 = por %p103, %p104
      %p106 = scmp.ne.s32.totalorder %s92, %s93
      %p107 = scmp.eq.s32.totalorder %s22, 2
      %p108 = por %p106, %p107
      %p110 = scmp.ne.s32.totalorder %s93, %s109
      %p111 = scmp.eq.s32.totalorder %s22, 0
      %p112 = por %p110, %p111
      %s113 = ssub.s32 %s16, %s23
      %p114 = scmp.eq.s32.totalorder %s113, 0
      %s116 = sadd.s32 %s115, 1
      %s117 = scalar_select %p114, %s115, %s116
      %p120 = pneg %p114
      %p121 = scmp.eq.s32.totalorder %s16, 2
      %p122 = por %p120, %p121
      %p123 = scmp.ne.s32.totalorder %s115, %s118
      %p124 = scmp.eq.s32.totalorder %s16, 0
      %p125 = por %p123, %p124
      %p126 = scmp.ne.s32.totalorder %s115, %s118
      %p127 = scmp.eq.s32.totalorder %s21, 2
      %p128 = por %p126, %p127
      %p129 = scmp.ne.s32.totalorder %s118, %s119
      %p130 = scmp.eq.s32.totalorder %s21, 0
      %p131 = por %p129, %p130
      %p132 = scmp.ne.s32.totalorder %s118, %s119
      %p133 = scmp.eq.s32.totalorder %s22, 2
      %p134 = por %p132, %p133
      %p136 = scmp.ne.s32.totalorder %s119, %s135
      %p137 = scmp.eq.s32.totalorder %s22, 0
      %p138 = por %p136, %p137
      %p139 = scmp.le.s32.totalorder 1, %s16
      %p140 = scmp.lt.s32.totalorder %s16, 4
      %p141 = pnand %p139, %p140
      %p142 = pneg %p141
      // Predicated region
      $region9: #{bfm_forward.1} parent=5 // pred_check
        _
      $region10: #{bfm_forward.1} parent=5 // pred_check_branch
        %144 = sbr.rel (%p141) target = $region12
      $region11: #{bfm_forward.1} parent=5 // pred_region
        %s145 = ssub.s32 %s16, 1
        // Predicated region
        $region13: #{bfm_forward.1} parent=11 // pred_check
          %p146 = pneg %p37
        $region14: #{bfm_forward.1} parent=11 // pred_check_branch
          %148 = sbr.rel (%p146) target = $region16
        $region15: #{bfm_forward.1} parent=11 // pred_region
          _
        $region16: #{bfm_forward.1} parent=11 // pred_fallthru
          _
        // Predicated region
        $region17: #{bfm_forward.1} parent=11 // pred_check
          %p149 = pneg %p58
        $region18: #{bfm_forward.1} parent=11 // pred_check_branch
          %151 = sbr.rel (%p149) target = $region20
        $region19: #{bfm_forward.1} parent=11 // pred_region
          _
        $region20: #{bfm_forward.1} parent=11 // pred_fallthru
          _
        // Predicated region
        $region21: #{bfm_forward.1} parent=11 // pred_check
          %p152 = pneg %p79
        $region22: #{bfm_forward.1} parent=11 // pred_check_branch
          %154 = sbr.rel (%p152) target = $region24
        $region23: #{bfm_forward.1} parent=11 // pred_region
          _
        $region24: #{bfm_forward.1} parent=11 // pred_fallthru
          _
      $region12: #{bfm_forward.1} parent=5 // pred_fallthru
        _
      %p155 = scmp.lt.s32.totalorder %s16, 3
      // Predicated region
      $region25: #{bfm_forward.1} parent=5 // pred_check
        %p156 = pneg %p155
      $region26: #{bfm_forward.1} parent=5 // pred_check_branch
        %158 = sbr.rel (%p156) target = $region28
      $region27: #{bfm_forward.1} parent=5 // pred_region
        // Predicated region
        $region29: #{bfm_forward.1} parent=27 // pred_check
          %p159 = pneg %p99
        $region30: #{bfm_forward.1} parent=27 // pred_check_branch
          %161 = sbr.rel (%p159) target = $region32
        $region31: #{bfm_forward.1} parent=27 // pred_region
          %s162 = sand.u32 %s89, 1
          %s163 = scalar_lea.sflag [#allocation3], %s162
          %s164 = sand.u32 %s89, 1
          %s165 = smul.addr %s164, 640
          %s166 = scalar_lea.vmem [#allocation2], %s165
          %s167 = smul.u32 8, %s16
          %s169 = ssub.s32 10240, 10240
          %170 = vsyncadd %s163, %s169
          %s171 = smul.addr %s167, 64
          %s172 = scalar_lea.hbm %s3, %s171
          %s173 = sshll.u32 %s166, 4
          %s174 = int_to_ptr.vmem [resolvable:$true] %s173
          %179 = dma.hbm_to_vmem [thread:$0]  %s172, 10240, %s174, %s163, 1536, 512, 32
        $region32: #{bfm_forward.1} parent=27 // pred_fallthru
          _
      $region28: #{bfm_forward.1} parent=5 // pred_fallthru
        _
      %p180 = scmp.le.s32.totalorder 1, %s16
      %p181 = scmp.lt.s32.totalorder %s16, 4
      %p182 = pnand %p180, %p181
      %p183 = pneg %p182
      // Predicated region
      $region33: #{bfm_forward.1} parent=5 // pred_check
        _
      $region34: #{bfm_forward.1} parent=5 // pred_check_branch
        %185 = sbr.rel (%p182) target = $region36
      $region35: #{bfm_forward.1} parent=5 // pred_region
        %s186 = ssub.s32 %s16, 1
        %s187 = sand.u32 %s92, 1
        %s188 = scalar_lea.sflag [#allocation3], %s187
        %s189 = sand.u32 %s92, 1
        %s190 = smul.addr %s189, 640
        %s191 = scalar_lea.vmem [#allocation2], %s190
        // Predicated region
        $region37: #{bfm_forward.1} parent=35 // pred_check
          %p192 = pneg %p105
        $region38: #{bfm_forward.1} parent=35 // pred_check_branch
          %194 = sbr.rel (%p192) target = $region40
        $region39: #{bfm_forward.1} parent=35 // pred_region
          %195 = dma.done %s188, 10240
        $region40: #{bfm_forward.1} parent=35 // pred_fallthru
          _
        %p196 = pneg %p37
        %p197 = pneg %p34
        %p198 = pneg %p58
        %p199 = pneg %p55
        %p200 = pneg %p79
        %p201 = pneg %p76
        %s202 = sand.u32 %s92, 1
        %s203 = scalar_lea.sflag [#allocation3], %s202
        %s204 = sand.u32 %s92, 1
        %s205 = smul.addr %s204, 640
        %s206 = scalar_lea.vmem [#allocation2], %s205
        %p207 = pneg %p105
        %p208 = pneg %p102
        %p209 = pneg %p131
        %p210 = pneg %p128
        %s211 = sand.u32 %s118, 1
        %s212 = scalar_lea.sflag [#allocation4], %s211
        %s213 = sand.u32 %s118, 1
        %s214 = smul.addr %s213, 32
        %s215 = scalar_lea.vmem [#allocation5], %s214
        %s216 = smul.u32 8, %s21
        %s217 = smul.u32 8, %s21
        %s218 = ssub.s32 20, %s217
        %p219 = scmp.lt.s32.totalorder %s218, 8
        %s220 = scalar_select %p219, %s218, 8
        %s221 = smul.u32 64, %s220
        %v223 = vld [vmem:[%s0] sm:$0xf]
        %v224 = vld [vmem:[%s191] sm:$0xff]
        %v225 = vld [vmem:[%s191 + $0x8] sm:$0xff]
        %v226 = vld [vmem:[%s191 + $0x10] sm:$0xff]
        %v227 = vld [vmem:[%s191 + $0x18] sm:$0xff]
        %v228 = vld [vmem:[%s191 + $0x20] sm:$0xff]
        %v229 = vld [vmem:[%s191 + $0x28] sm:$0xff]
        %v230 = vld [vmem:[%s191 + $0x30] sm:$0xff]
        %v231 = vld [vmem:[%s191 + $0x38] sm:$0xff]
        %v232 = vld [vmem:[%s191 + $0x40] sm:$0xff]
        %v233 = vld [vmem:[%s191 + $0x48] sm:$0xff]
        %v234 = vld [vmem:[%s191 + $0x50] sm:$0xff]
        %v235 = vld [vmem:[%s191 + $0x58] sm:$0xff]
        %v236 = vld [vmem:[%s191 + $0x60] sm:$0xff]
        %v237 = vld [vmem:[%s191 + $0x68] sm:$0xff]
        %v238 = vld [vmem:[%s191 + $0x70] sm:$0xff]
        %v239 = vld [vmem:[%s191 + $0x78] sm:$0xff]
        %v240 = vld [vmem:[%s191 + $0x80] sm:$0xff]
        %v241 = vld [vmem:[%s191 + $0x88] sm:$0xff]
        %v242 = vld [vmem:[%s191 + $0x90] sm:$0xff]
        %v243 = vld [vmem:[%s191 + $0x98] sm:$0xff]
        %v244 = vld [vmem:[%s191 + $0xa0] sm:$0xff]
        %v245 = vld [vmem:[%s191 + $0xa8] sm:$0xff]
        %v246 = vld [vmem:[%s191 + $0xb0] sm:$0xff]
        %v247 = vld [vmem:[%s191 + $0xb8] sm:$0xff]
        %v248 = vld [vmem:[%s191 + $0xc0] sm:$0xff]
        %v249 = vld [vmem:[%s191 + $0xc8] sm:$0xff]
        %v250 = vld [vmem:[%s191 + $0xd0] sm:$0xff]
        %v251 = vld [vmem:[%s191 + $0xd8] sm:$0xff]
        %v252 = vld [vmem:[%s191 + $0xe0] sm:$0xff]
        %v253 = vld [vmem:[%s191 + $0xe8] sm:$0xff]
        %v254 = vld [vmem:[%s191 + $0xf0] sm:$0xff]
        %v255 = vld [vmem:[%s191 + $0xf8] sm:$0xff]
        %v256 = vld [vmem:[%s191 + $0x100] sm:$0xff]
        %v257 = vld [vmem:[%s191 + $0x108] sm:$0xff]
        %v258 = vld [vmem:[%s191 + $0x110] sm:$0xff]
        %v259 = vld [vmem:[%s191 + $0x118] sm:$0xff]
        %v260 = vld [vmem:[%s191 + $0x120] sm:$0xff]
        %v261 = vld [vmem:[%s191 + $0x128] sm:$0xff]
        %v262 = vld [vmem:[%s191 + $0x130] sm:$0xff]
        %v263 = vld [vmem:[%s191 + $0x138] sm:$0xff]
        %v264 = vld [vmem:[%s191 + $0x140] sm:$0xff]
        %v265 = vld [vmem:[%s191 + $0x148] sm:$0xff]
        %v266 = vld [vmem:[%s191 + $0x150] sm:$0xff]
        %v267 = vld [vmem:[%s191 + $0x158] sm:$0xff]
        %v268 = vld [vmem:[%s191 + $0x160] sm:$0xff]
        %v269 = vld [vmem:[%s191 + $0x168] sm:$0xff]
        %v270 = vld [vmem:[%s191 + $0x170] sm:$0xff]
        %v271 = vld [vmem:[%s191 + $0x178] sm:$0xff]
        %v272 = vld [vmem:[%s191 + $0x180] sm:$0xff]
        %v273 = vld [vmem:[%s191 + $0x188] sm:$0xff]
        %v274 = vld [vmem:[%s191 + $0x190] sm:$0xff]
        %v275 = vld [vmem:[%s191 + $0x198] sm:$0xff]
        %v276 = vld [vmem:[%s191 + $0x1a0] sm:$0xff]
        %v277 = vld [vmem:[%s191 + $0x1a8] sm:$0xff]
        %v278 = vld [vmem:[%s191 + $0x1b0] sm:$0xff]
        %v279 = vld [vmem:[%s191 + $0x1b8] sm:$0xff]
        %v280 = vld [vmem:[%s191 + $0x1c0] sm:$0xff]
        %v281 = vld [vmem:[%s191 + $0x1c8] sm:$0xff]
        %v282 = vld [vmem:[%s191 + $0x1d0] sm:$0xff]
        %v283 = vld [vmem:[%s191 + $0x1d8] sm:$0xff]
        %v284 = vld [vmem:[%s191 + $0x1e0] sm:$0xff]
        %v285 = vld [vmem:[%s191 + $0x1e8] sm:$0xff]
        %v286 = vld [vmem:[%s191 + $0x1f0] sm:$0xff]
        %v287 = vld [vmem:[%s191 + $0x1f8] sm:$0xff]
        %v288 = vld [vmem:[%s191 + $0x200] sm:$0xff]
        %v289 = vld [vmem:[%s191 + $0x208] sm:$0xff]
        %v290 = vld [vmem:[%s191 + $0x210] sm:$0xff]
        %v291 = vld [vmem:[%s191 + $0x218] sm:$0xff]
        %v292 = vld [vmem:[%s191 + $0x220] sm:$0xff]
        %v293 = vld [vmem:[%s191 + $0x228] sm:$0xff]
        %v294 = vld [vmem:[%s191 + $0x230] sm:$0xff]
        %v295 = vld [vmem:[%s191 + $0x238] sm:$0xff]
        %v296 = vld [vmem:[%s191 + $0x240] sm:$0xff]
        %v297 = vld [vmem:[%s191 + $0x248] sm:$0xff]
        %v298 = vld [vmem:[%s191 + $0x250] sm:$0xff]
        %v299 = vld [vmem:[%s191 + $0x258] sm:$0xff]
        %v300 = vld [vmem:[%s191 + $0x260] sm:$0xff]
        %v301 = vld [vmem:[%s191 + $0x268] sm:$0xff]
        %v302 = vld [vmem:[%s191 + $0x270] sm:$0xff]
        %v303 = vld [vmem:[%s191 + $0x278] sm:$0xff]
        %v306 = vunpack.c.l.s4 1983009808
        %v307 = vunpack.c.0.s8 %v306
        %v308 = vlaneseq
        %v309 = vshrl.u32 %v308, 7
        %v310 = vsub.s32 %v307, %v309
        %v311 = vrot.slane %v223, %v310
        %v312 = vcombine.high %v311, %v311
        %v394 = vunpack.c.l.b16 %v224
        %v395 = vunpack.c.h.b16 %v224
        %v396 = vunpack.c.l.b16 %v225
        %v397 = vunpack.c.h.b16 %v225
        %v398 = vunpack.c.l.b16 %v226
        %v399 = vunpack.c.h.b16 %v226
        %v400 = vunpack.c.l.b16 %v227
        %v401 = vunpack.c.h.b16 %v227
        %v402 = vunpack.c.l.b16 %v228
        %v403 = vunpack.c.h.b16 %v228
        %v404 = vunpack.c.l.b16 %v229
        %v405 = vunpack.c.h.b16 %v229
        %v406 = vunpack.c.l.b16 %v230
        %v407 = vunpack.c.h.b16 %v230
        %v408 = vunpack.c.l.b16 %v231
        %v409 = vunpack.c.h.b16 %v231
        %v410 = vunpack.c.l.b16 %v232
        %v411 = vunpack.c.h.b16 %v232
        %v412 = vunpack.c.l.b16 %v233
        %v413 = vunpack.c.h.b16 %v233
        %v414 = vunpack.c.l.b16 %v234
        %v415 = vunpack.c.h.b16 %v234
        %v416 = vunpack.c.l.b16 %v235
        %v417 = vunpack.c.h.b16 %v235
        %v418 = vunpack.c.l.b16 %v236
        %v419 = vunpack.c.h.b16 %v236
        %v420 = vunpack.c.l.b16 %v237
        %v421 = vunpack.c.h.b16 %v237
        %v422 = vunpack.c.l.b16 %v238
        %v423 = vunpack.c.h.b16 %v238
        %v424 = vunpack.c.l.b16 %v239
        %v425 = vunpack.c.h.b16 %v239
        %v426 = vunpack.c.l.b16 %v240
        %v427 = vunpack.c.h.b16 %v240
        %v428 = vunpack.c.l.b16 %v241
        %v429 = vunpack.c.h.b16 %v241
        %v430 = vunpack.c.l.b16 %v242
        %v431 = vunpack.c.h.b16 %v242
        %v432 = vunpack.c.l.b16 %v243
        %v433 = vunpack.c.h.b16 %v243
        %v434 = vunpack.c.l.b16 %v244
        %v435 = vunpack.c.h.b16 %v244
        %v436 = vunpack.c.l.b16 %v245
        %v437 = vunpack.c.h.b16 %v245
        %v438 = vunpack.c.l.b16 %v246
        %v439 = vunpack.c.h.b16 %v246
        %v440 = vunpack.c.l.b16 %v247
        %v441 = vunpack.c.h.b16 %v247
        %v442 = vunpack.c.l.b16 %v248
        %v443 = vunpack.c.h.b16 %v248
        %v444 = vunpack.c.l.b16 %v249
        %v445 = vunpack.c.h.b16 %v249
        %v446 = vunpack.c.l.b16 %v250
        %v447 = vunpack.c.h.b16 %v250
        %v448 = vunpack.c.l.b16 %v251
        %v449 = vunpack.c.h.b16 %v251
        %v450 = vunpack.c.l.b16 %v252
        %v451 = vunpack.c.h.b16 %v252
        %v452 = vunpack.c.l.b16 %v253
        %v453 = vunpack.c.h.b16 %v253
        %v454 = vunpack.c.l.b16 %v254
        %v455 = vunpack.c.h.b16 %v254
        %v456 = vunpack.c.l.b16 %v255
        %v457 = vunpack.c.h.b16 %v255
        %v458 = vunpack.c.l.b16 %v256
        %v459 = vunpack.c.h.b16 %v256
        %v460 = vunpack.c.l.b16 %v257
        %v461 = vunpack.c.h.b16 %v257
        %v462 = vunpack.c.l.b16 %v258
        %v463 = vunpack.c.h.b16 %v258
        %v464 = vunpack.c.l.b16 %v259
        %v465 = vunpack.c.h.b16 %v259
        %v466 = vunpack.c.l.b16 %v260
        %v467 = vunpack.c.h.b16 %v260
        %v468 = vunpack.c.l.b16 %v261
        %v469 = vunpack.c.h.b16 %v261
        %v470 = vunpack.c.l.b16 %v262
        %v471 = vunpack.c.h.b16 %v262
        %v472 = vunpack.c.l.b16 %v263
        %v473 = vunpack.c.h.b16 %v263
        %v474 = vunpack.c.l.b16 %v264
        %v475 = vunpack.c.h.b16 %v264
        %v476 = vunpack.c.l.b16 %v265
        %v477 = vunpack.c.h.b16 %v265
        %v478 = vunpack.c.l.b16 %v266
        %v479 = vunpack.c.h.b16 %v266
        %v480 = vunpack.c.l.b16 %v267
        %v481 = vunpack.c.h.b16 %v267
        %v482 = vunpack.c.l.b16 %v268
        %v483 = vunpack.c.h.b16 %v268
        %v484 = vunpack.c.l.b16 %v269
        %v485 = vunpack.c.h.b16 %v269
        %v486 = vunpack.c.l.b16 %v270
        %v487 = vunpack.c.h.b16 %v270
        %v488 = vunpack.c.l.b16 %v271
        %v489 = vunpack.c.h.b16 %v271
        %v490 = vunpack.c.l.b16 %v272
        %v491 = vunpack.c.h.b16 %v272
        %v492 = vunpack.c.l.b16 %v273
        %v493 = vunpack.c.h.b16 %v273
        %v494 = vunpack.c.l.b16 %v274
        %v495 = vunpack.c.h.b16 %v274
        %v496 = vunpack.c.l.b16 %v275
        %v497 = vunpack.c.h.b16 %v275
        %v498 = vunpack.c.l.b16 %v276
        %v499 = vunpack.c.h.b16 %v276
        %v500 = vunpack.c.l.b16 %v277
        %v501 = vunpack.c.h.b16 %v277
        %v502 = vunpack.c.l.b16 %v278
        %v503 = vunpack.c.h.b16 %v278
        %v504 = vunpack.c.l.b16 %v279
        %v505 = vunpack.c.h.b16 %v279
        %v506 = vunpack.c.l.b16 %v280
        %v507 = vunpack.c.h.b16 %v280
        %v508 = vunpack.c.l.b16 %v281
        %v509 = vunpack.c.h.b16 %v281
        %v510 = vunpack.c.l.b16 %v282
        %v511 = vunpack.c.h.b16 %v282
        %v512 = vunpack.c.l.b16 %v283
        %v513 = vunpack.c.h.b16 %v283
        %v514 = vunpack.c.l.b16 %v284
        %v515 = vunpack.c.h.b16 %v284
        %v516 = vunpack.c.l.b16 %v285
        %v517 = vunpack.c.h.b16 %v285
        %v518 = vunpack.c.l.b16 %v286
        %v519 = vunpack.c.h.b16 %v286
        %v520 = vunpack.c.l.b16 %v287
        %v521 = vunpack.c.h.b16 %v287
        %v522 = vunpack.c.l.b16 %v288
        %v523 = vunpack.c.h.b16 %v288
        %v524 = vunpack.c.l.b16 %v289
        %v525 = vunpack.c.h.b16 %v289
        %v526 = vunpack.c.l.b16 %v290
        %v527 = vunpack.c.h.b16 %v290
        %v528 = vunpack.c.l.b16 %v291
        %v529 = vunpack.c.h.b16 %v291
        %v530 = vunpack.c.l.b16 %v292
        %v531 = vunpack.c.h.b16 %v292
        %v532 = vunpack.c.l.b16 %v293
        %v533 = vunpack.c.h.b16 %v293
        %v534 = vunpack.c.l.b16 %v294
        %v535 = vunpack.c.h.b16 %v294
        %v536 = vunpack.c.l.b16 %v295
        %v537 = vunpack.c.h.b16 %v295
        %v538 = vunpack.c.l.b16 %v296
        %v539 = vunpack.c.h.b16 %v296
        %v540 = vunpack.c.l.b16 %v297
        %v541 = vunpack.c.h.b16 %v297
        %v542 = vunpack.c.l.b16 %v298
        %v543 = vunpack.c.h.b16 %v298
        %v544 = vunpack.c.l.b16 %v299
        %v545 = vunpack.c.h.b16 %v299
        %v546 = vunpack.c.l.b16 %v300
        %v547 = vunpack.c.h.b16 %v300
        %v548 = vunpack.c.l.b16 %v301
        %v549 = vunpack.c.h.b16 %v301
        %v550 = vunpack.c.l.b16 %v302
        %v551 = vunpack.c.h.b16 %v302
        %v552 = vunpack.c.l.b16 %v303
        %v553 = vunpack.c.h.b16 %v303
        %v554 = vpack.c.b16 %v402, %v394
        %v555 = vpack.c.b16 %v403, %v395
        %v556 = vpack.c.b16 %v404, %v396
        %v557 = vpack.c.b16 %v405, %v397
        %v558 = vpack.c.b16 %v406, %v398
        %v559 = vpack.c.b16 %v407, %v399
        %v560 = vpack.c.b16 %v408, %v400
        %v561 = vpack.c.b16 %v409, %v401
        %v562 = vpack.c.b16 %v418, %v410
        %v563 = vpack.c.b16 %v419, %v411
        %v564 = vpack.c.b16 %v420, %v412
        %v565 = vpack.c.b16 %v421, %v413
        %v566 = vpack.c.b16 %v422, %v414
        %v567 = vpack.c.b16 %v423, %v415
        %v568 = vpack.c.b16 %v424, %v416
        %v569 = vpack.c.b16 %v425, %v417
        %v570 = vpack.c.b16 %v434, %v426
        %v571 = vpack.c.b16 %v435, %v427
        %v572 = vpack.c.b16 %v436, %v428
        %v573 = vpack.c.b16 %v437, %v429
        %v574 = vpack.c.b16 %v438, %v430
        %v575 = vpack.c.b16 %v439, %v431
        %v576 = vpack.c.b16 %v440, %v432
        %v577 = vpack.c.b16 %v441, %v433
        %v578 = vpack.c.b16 %v450, %v442
        %v579 = vpack.c.b16 %v451, %v443
        %v580 = vpack.c.b16 %v452, %v444
        %v581 = vpack.c.b16 %v453, %v445
        %v582 = vpack.c.b16 %v454, %v446
        %v583 = vpack.c.b16 %v455, %v447
        %v584 = vpack.c.b16 %v456, %v448
        %v585 = vpack.c.b16 %v457, %v449
        %v586 = vpack.c.b16 %v466, %v458
        %v587 = vpack.c.b16 %v467, %v459
        %v588 = vpack.c.b16 %v468, %v460
        %v589 = vpack.c.b16 %v469, %v461
        %v590 = vpack.c.b16 %v470, %v462
        %v591 = vpack.c.b16 %v471, %v463
        %v592 = vpack.c.b16 %v472, %v464
        %v593 = vpack.c.b16 %v473, %v465
        %v594 = vpack.c.b16 %v482, %v474
        %v595 = vpack.c.b16 %v483, %v475
        %v596 = vpack.c.b16 %v484, %v476
        %v597 = vpack.c.b16 %v485, %v477
        %v598 = vpack.c.b16 %v486, %v478
        %v599 = vpack.c.b16 %v487, %v479
        %v600 = vpack.c.b16 %v488, %v480
        %v601 = vpack.c.b16 %v489, %v481
        %v602 = vpack.c.b16 %v498, %v490
        %v603 = vpack.c.b16 %v499, %v491
        %v604 = vpack.c.b16 %v500, %v492
        %v605 = vpack.c.b16 %v501, %v493
        %v606 = vpack.c.b16 %v502, %v494
        %v607 = vpack.c.b16 %v503, %v495
        %v608 = vpack.c.b16 %v504, %v496
        %v609 = vpack.c.b16 %v505, %v497
        %v610 = vpack.c.b16 %v514, %v506
        %v611 = vpack.c.b16 %v515, %v507
        %v612 = vpack.c.b16 %v516, %v508
        %v613 = vpack.c.b16 %v517, %v509
        %v614 = vpack.c.b16 %v518, %v510
        %v615 = vpack.c.b16 %v519, %v511
        %v616 = vpack.c.b16 %v520, %v512
        %v617 = vpack.c.b16 %v521, %v513
        %v618 = vpack.c.b16 %v530, %v522
        %v619 = vpack.c.b16 %v531, %v523
        %v620 = vpack.c.b16 %v532, %v524
        %v621 = vpack.c.b16 %v533, %v525
        %v622 = vpack.c.b16 %v534, %v526
        %v623 = vpack.c.b16 %v535, %v527
        %v624 = vpack.c.b16 %v536, %v528
        %v625 = vpack.c.b16 %v537, %v529
        %v626 = vpack.c.b16 %v546, %v538
        %v627 = vpack.c.b16 %v547, %v539
        %v628 = vpack.c.b16 %v548, %v540
        %v629 = vpack.c.b16 %v549, %v541
        %v630 = vpack.c.b16 %v550, %v542
        %v631 = vpack.c.b16 %v551, %v543
        %v632 = vpack.c.b16 %v552, %v544
        %v633 = vpack.c.b16 %v553, %v545
        %vm714 = vcmask 261120
        %v716 = vsel %vm714, %v312, 0
        %718 = vmatprep.subr.bf16.mxu0 %v611
        %719 = vmatpush1.bf16.msra.mxu0 %v610
        %720 = vmatprep.subr.bf16.mxu0 %v603
        %721 = vmatpush1.bf16.msra.mxu0 %v602
        %722 = vmatprep.subr.bf16.mxu0 %v595
        %723 = vmatpush1.bf16.msra.mxu0 %v594
        %724 = vmatprep.subr.bf16.mxu0 %v587
        %725 = vmatpush1.bf16.msra.mxu0 %v586
        %726 = vmatprep.subr.bf16.mxu0 %v579
        %727 = vmatpush1.bf16.msra.mxu0 %v578
        %728 = vmatprep.subr.bf16.mxu0 %v571
        %729 = vmatpush1.bf16.msra.mxu0 %v570
        %730 = vmatprep.subr.bf16.mxu0 %v563
        %731 = vmatpush1.bf16.msra.mxu0 %v562
        %732 = vmatprep.subr.bf16.mxu0 %v555
        %733 = vmatpush1.bf16.msra.mxu0 %v554
        %734 = vmatprep.subr.bf16.mxu0 0
        %735 = vmatpush2.bf16.msra.mxu0 0
        %736 = vmatprep.subr.bf16.mxu0 0
        %737 = vmatpush2.bf16.msra.mxu0 0
        %738 = vmatprep.subr.bf16.mxu0 0
        %739 = vmatpush2.bf16.msra.mxu0 0
        %740 = vmatprep.subr.bf16.mxu0 0
        %741 = vmatpush2.bf16.msra.mxu0 0
        %742 = vmatprep.subr.bf16.mxu0 0
        %743 = vmatpush2.bf16.msra.mxu0 0
        %744 = vmatprep.subr.bf16.mxu0 0
        %745 = vmatpush2.bf16.msra.mxu0 0
        %746 = vmatprep.subr.bf16.mxu0 %v627
        %747 = vmatpush2.bf16.msra.mxu0 %v626
        %748 = vmatprep.subr.bf16.mxu0 %v619
        %749 = vmatpush2.bf16.msra.mxu0 %v618
        %750 = vmatprep.mubr.bf16.mxu0 %v716
        %751 = vmatmul.mubr.bf16.gmra.mxu0 %v311
        %v752 = vpop.f32.mrf.mxu0
        %v753 = vadd.f32 0.0, %v752
        %v754 = vpop.f32.mrf.mxu0
        %v755 = vadd.f32 0.0, %v754
        %v756 = vpop.f32.mrf.mxu0
        %v757 = vpop.f32.mrf.mxu0
        %758 = vdwg.mxu0
        %759 = vmatprep.subr.bf16.mxu0 %v613
        %760 = vmatpush1.bf16.msra.mxu0 %v612
        %761 = vmatprep.subr.bf16.mxu0 %v605
        %762 = vmatpush1.bf16.msra.mxu0 %v604
        %763 = vmatprep.subr.bf16.mxu0 %v597
        %764 = vmatpush1.bf16.msra.mxu0 %v596
        %765 = vmatprep.subr.bf16.mxu0 %v589
        %766 = vmatpush1.bf16.msra.mxu0 %v588
        %767 = vmatprep.subr.bf16.mxu0 %v581
        %768 = vmatpush1.bf16.msra.mxu0 %v580
        %769 = vmatprep.subr.bf16.mxu0 %v573
        %770 = vmatpush1.bf16.msra.mxu0 %v572
        %771 = vmatprep.subr.bf16.mxu0 %v565
        %772 = vmatpush1.bf16.msra.mxu0 %v564
        %773 = vmatprep.subr.bf16.mxu0 %v557
        %774 = vmatpush1.bf16.msra.mxu0 %v556
        %775 = vmatprep.subr.bf16.mxu0 0
        %776 = vmatpush2.bf16.msra.mxu0 0
        %777 = vmatprep.subr.bf16.mxu0 0
        %778 = vmatpush2.bf16.msra.mxu0 0
        %779 = vmatprep.subr.bf16.mxu0 0
        %780 = vmatpush2.bf16.msra.mxu0 0
        %781 = vmatprep.subr.bf16.mxu0 0
        %782 = vmatpush2.bf16.msra.mxu0 0
        %783 = vmatprep.subr.bf16.mxu0 0
        %784 = vmatpush2.bf16.msra.mxu0 0
        %785 = vmatprep.subr.bf16.mxu0 0
        %786 = vmatpush2.bf16.msra.mxu0 0
        %787 = vmatprep.subr.bf16.mxu0 %v629
        %788 = vmatpush2.bf16.msra.mxu0 %v628
        %789 = vmatprep.subr.bf16.mxu0 %v621
        %790 = vmatpush2.bf16.msra.mxu0 %v620
        %791 = vmatprep.mubr.bf16.mxu0 %v716
        %792 = vmatmul.mubr.bf16.gmra.mxu0 %v311
        %v793 = vpop.f32.mrf.mxu0
        %v794 = vadd.f32 0.0, %v793
        %v795 = vpop.f32.mrf.mxu0
        %v796 = vadd.f32 0.0, %v795
        %v797 = vpop.f32.mrf.mxu0
        %v798 = vpop.f32.mrf.mxu0
        %799 = vdwg.mxu0
        %800 = vmatprep.subr.bf16.mxu0 %v615
        %801 = vmatpush1.bf16.msra.mxu0 %v614
        %802 = vmatprep.subr.bf16.mxu0 %v607
        %803 = vmatpush1.bf16.msra.mxu0 %v606
        %804 = vmatprep.subr.bf16.mxu0 %v599
        %805 = vmatpush1.bf16.msra.mxu0 %v598
        %806 = vmatprep.subr.bf16.mxu0 %v591
        %807 = vmatpush1.bf16.msra.mxu0 %v590
        %808 = vmatprep.subr.bf16.mxu0 %v583
        %809 = vmatpush1.bf16.msra.mxu0 %v582
        %810 = vmatprep.subr.bf16.mxu0 %v575
        %811 = vmatpush1.bf16.msra.mxu0 %v574
        %812 = vmatprep.subr.bf16.mxu0 %v567
        %813 = vmatpush1.bf16.msra.mxu0 %v566
        %814 = vmatprep.subr.bf16.mxu0 %v559
        %815 = vmatpush1.bf16.msra.mxu0 %v558
        %816 = vmatprep.subr.bf16.mxu0 0
        %817 = vmatpush2.bf16.msra.mxu0 0
        %818 = vmatprep.subr.bf16.mxu0 0
        %819 = vmatpush2.bf16.msra.mxu0 0
        %820 = vmatprep.subr.bf16.mxu0 0
        %821 = vmatpush2.bf16.msra.mxu0 0
        %822 = vmatprep.subr.bf16.mxu0 0
        %823 = vmatpush2.bf16.msra.mxu0 0
        %824 = vmatprep.subr.bf16.mxu0 0
        %825 = vmatpush2.bf16.msra.mxu0 0
        %826 = vmatprep.subr.bf16.mxu0 0
        %827 = vmatpush2.bf16.msra.mxu0 0
        %828 = vmatprep.subr.bf16.mxu0 %v631
        %829 = vmatpush2.bf16.msra.mxu0 %v630
        %830 = vmatprep.subr.bf16.mxu0 %v623
        %831 = vmatpush2.bf16.msra.mxu0 %v622
        %832 = vmatprep.mubr.bf16.mxu0 %v716
        %833 = vmatmul.mubr.bf16.gmra.mxu0 %v311
        %v834 = vpop.f32.mrf.mxu0
        %v835 = vadd.f32 0.0, %v834
        %v836 = vpop.f32.mrf.mxu0
        %v837 = vadd.f32 0.0, %v836
        %v838 = vpop.f32.mrf.mxu0
        %v839 = vpop.f32.mrf.mxu0
        %840 = vdwg.mxu0
        %841 = vmatprep.subr.bf16.mxu0 %v617
        %842 = vmatpush1.bf16.msra.mxu0 %v616
        %843 = vmatprep.subr.bf16.mxu0 %v609
        %844 = vmatpush1.bf16.msra.mxu0 %v608
        %845 = vmatprep.subr.bf16.mxu0 %v601
        %846 = vmatpush1.bf16.msra.mxu0 %v600
        %847 = vmatprep.subr.bf16.mxu0 %v593
        %848 = vmatpush1.bf16.msra.mxu0 %v592
        %849 = vmatprep.subr.bf16.mxu0 %v585
        %850 = vmatpush1.bf16.msra.mxu0 %v584
        %851 = vmatprep.subr.bf16.mxu0 %v577
        %852 = vmatpush1.bf16.msra.mxu0 %v576
        %853 = vmatprep.subr.bf16.mxu0 %v569
        %854 = vmatpush1.bf16.msra.mxu0 %v568
        %855 = vmatprep.subr.bf16.mxu0 %v561
        %856 = vmatpush1.bf16.msra.mxu0 %v560
        %857 = vmatprep.subr.bf16.mxu0 0
        %858 = vmatpush2.bf16.msra.mxu0 0
        %859 = vmatprep.subr.bf16.mxu0 0
        %860 = vmatpush2.bf16.msra.mxu0 0
        %861 = vmatprep.subr.bf16.mxu0 0
        %862 = vmatpush2.bf16.msra.mxu0 0
        %863 = vmatprep.subr.bf16.mxu0 0
        %864 = vmatpush2.bf16.msra.mxu0 0
        %865 = vmatprep.subr.bf16.mxu0 0
        %866 = vmatpush2.bf16.msra.mxu0 0
        %867 = vmatprep.subr.bf16.mxu0 0
        %868 = vmatpush2.bf16.msra.mxu0 0
        %869 = vmatprep.subr.bf16.mxu0 %v633
        %870 = vmatpush2.bf16.msra.mxu0 %v632
        %871 = vmatprep.subr.bf16.mxu0 %v625
        %872 = vmatpush2.bf16.msra.mxu0 %v624
        %873 = vmatprep.mubr.bf16.mxu0 %v716
        %874 = vmatmul.mubr.bf16.gmra.mxu0 %v311
        %v875 = vpop.f32.mrf.mxu0
        %v876 = vadd.f32 0.0, %v875
        %v877 = vpop.f32.mrf.mxu0
        %v878 = vadd.f32 0.0, %v877
        %v879 = vpop.f32.mrf.mxu0
        %v880 = vpop.f32.mrf.mxu0
        %881 = vdwg.mxu0
        %v882 = vld [vmem:[%s1] sm:$0x7]
        %v883 = vld [vmem:[%s2] sm:$0x7]
        %885 = vset.pattern.permute.xlu0 0
        %886 = vperm.xlu0 %885, %v883
        %v887 = vpop.permute.xlu0 %886
        %vm889 = vcmask 23552
        %v891 = vsel %vm889, %v882, 0
        %vm893 = vcmask 1042432
        %v895 = vsel %vm893, %v753, 0
        %v898 = vsel %vm893, %v755, 0
        %v901 = vsel %vm893, %v794, 0
        %v904 = vsel %vm893, %v796, 0
        %v907 = vsel %vm893, %v835, 0
        %v910 = vsel %vm893, %v837, 0
        %v913 = vsel %vm893, %v876, 0
        %v916 = vsel %vm893, %v878, 0
        %918 = vmatprep.subr.mxu0 0.0
        %919 = vmatpush1.msra.mxu0 0.0
        %920 = vmatprep.subr.mxu0 0.0
        %921 = vmatpush1.msra.mxu0 0.0
        %922 = vmatprep.subr.mxu0 0.0
        %923 = vmatpush1.msra.mxu0 0.0
        %924 = vmatprep.subr.mxu0 0.0
        %925 = vmatpush1.msra.mxu0 0.0
        %926 = vmatprep.subr.mxu0 0.0
        %927 = vmatpush1.msra.mxu0 0.0
        %928 = vmatprep.subr.mxu0 0.0
        %929 = vmatpush1.msra.mxu0 0.0
        %930 = vmatprep.subr.mxu0 0.0
        %931 = vmatpush1.msra.mxu0 0.0
        %932 = vmatprep.subr.mxu0 0.0
        %933 = vmatpush1.msra.mxu0 0.0
        %934 = vmatprep.subr.mxu0 0.0
        %935 = vmatpush1.msra.mxu0 0.0
        %936 = vmatprep.subr.mxu0 0.0
        %937 = vmatpush1.msra.mxu0 0.0
        %938 = vmatprep.subr.mxu0 0.0
        %939 = vmatpush1.msra.mxu0 0.0
        %940 = vmatprep.subr.mxu0 0.0
        %941 = vmatpush1.msra.mxu0 0.0
        %942 = vmatprep.subr.mxu0 0.0
        %943 = vmatpush1.msra.mxu0 0.0
        %944 = vmatprep.subr.mxu0 0.0
        %945 = vmatpush1.msra.mxu0 0.0
        %946 = vmatprep.subr.mxu0 0.0
        %947 = vmatpush1.msra.mxu0 0.0
        %948 = vmatprep.subr.mxu0 %v898
        %949 = vmatpush1.msra.mxu0 %v895
        %950 = vmatprep.subr.mxu0 0.0
        %951 = vmatpush2.msra.mxu0 0.0
        %952 = vmatprep.subr.mxu0 0.0
        %953 = vmatpush2.msra.mxu0 0.0
        %954 = vmatprep.subr.mxu0 0.0
        %955 = vmatpush2.msra.mxu0 0.0
        %956 = vmatprep.subr.mxu0 0.0
        %957 = vmatpush2.msra.mxu0 0.0
        %958 = vmatprep.subr.mxu0 0.0
        %959 = vmatpush2.msra.mxu0 0.0
        %960 = vmatprep.subr.mxu0 0.0
        %961 = vmatpush2.msra.mxu0 0.0
        %962 = vmatprep.subr.mxu0 0.0
        %963 = vmatpush2.msra.mxu0 0.0
        %964 = vmatprep.subr.mxu0 0.0
        %965 = vmatpush2.msra.mxu0 0.0
        %966 = vmatprep.subr.mxu0 0.0
        %967 = vmatpush2.msra.mxu0 0.0
        %968 = vmatprep.subr.mxu0 0.0
        %969 = vmatpush2.msra.mxu0 0.0
        %970 = vmatprep.subr.mxu0 0.0
        %971 = vmatpush2.msra.mxu0 0.0
        %972 = vmatprep.subr.mxu0 0.0
        %973 = vmatpush2.msra.mxu0 0.0
        %974 = vmatprep.subr.mxu0 0.0
        %975 = vmatpush2.msra.mxu0 0.0
        %976 = vmatprep.subr.mxu0 0.0
        %977 = vmatpush2.msra.mxu0 0.0
        %978 = vmatprep.subr.mxu0 0.0
        %979 = vmatpush2.msra.mxu0 0.0
        %980 = vmatprep.subr.mxu0 0.0
        %981 = vmatpush2.msra.mxu0 0.0
        %982 = vmatprep.mubr.f32.mxu0 0.0
        %983 = vmatmul.mubr.f32.gmra.mxu0 %v891
        %v984 = vpop.f32.mrf.mxu0
        %v985 = vadd.f32 %v887, %v984
        %v986 = vpop.f32.mrf.mxu0
        %v987 = vadd.f32 %v887, %v986
        %988 = vdwg.mxu0
        %989 = vmatprep.subr.mxu0 0.0
        %990 = vmatpush1.msra.mxu0 0.0
        %991 = vmatprep.subr.mxu0 0.0
        %992 = vmatpush1.msra.mxu0 0.0
        %993 = vmatprep.subr.mxu0 0.0
        %994 = vmatpush1.msra.mxu0 0.0
        %995 = vmatprep.subr.mxu0 0.0
        %996 = vmatpush1.msra.mxu0 0.0
        %997 = vmatprep.subr.mxu0 0.0
        %998 = vmatpush1.msra.mxu0 0.0
        %999 = vmatprep.subr.mxu0 0.0
        %1000 = vmatpush1.msra.mxu0 0.0
        %1001 = vmatprep.subr.mxu0 0.0
        %1002 = vmatpush1.msra.mxu0 0.0
        %1003 = vmatprep.subr.mxu0 0.0
        %1004 = vmatpush1.msra.mxu0 0.0
        %1005 = vmatprep.subr.mxu0 0.0
        %1006 = vmatpush1.msra.mxu0 0.0
        %1007 = vmatprep.subr.mxu0 0.0
        %1008 = vmatpush1.msra.mxu0 0.0
        %1009 = vmatprep.subr.mxu0 0.0
        %1010 = vmatpush1.msra.mxu0 0.0
        %1011 = vmatprep.subr.mxu0 0.0
        %1012 = vmatpush1.msra.mxu0 0.0
        %1013 = vmatprep.subr.mxu0 0.0
        %1014 = vmatpush1.msra.mxu0 0.0
        %1015 = vmatprep.subr.mxu0 0.0
        %1016 = vmatpush1.msra.mxu0 0.0
        %1017 = vmatprep.subr.mxu0 0.0
        %1018 = vmatpush1.msra.mxu0 0.0
        %1019 = vmatprep.subr.mxu0 %v904
        %1020 = vmatpush1.msra.mxu0 %v901
        %1021 = vmatprep.subr.mxu0 0.0
        %1022 = vmatpush2.msra.mxu0 0.0
        %1023 = vmatprep.subr.mxu0 0.0
        %1024 = vmatpush2.msra.mxu0 0.0
        %1025 = vmatprep.subr.mxu0 0.0
        %1026 = vmatpush2.msra.mxu0 0.0
        %1027 = vmatprep.subr.mxu0 0.0
        %1028 = vmatpush2.msra.mxu0 0.0
        %1029 = vmatprep.subr.mxu0 0.0
        %1030 = vmatpush2.msra.mxu0 0.0
        %1031 = vmatprep.subr.mxu0 0.0
        %1032 = vmatpush2.msra.mxu0 0.0
        %1033 = vmatprep.subr.mxu0 0.0
        %1034 = vmatpush2.msra.mxu0 0.0
        %1035 = vmatprep.subr.mxu0 0.0
        %1036 = vmatpush2.msra.mxu0 0.0
        %1037 = vmatprep.subr.mxu0 0.0
        %1038 = vmatpush2.msra.mxu0 0.0
        %1039 = vmatprep.subr.mxu0 0.0
        %1040 = vmatpush2.msra.mxu0 0.0
        %1041 = vmatprep.subr.mxu0 0.0
        %1042 = vmatpush2.msra.mxu0 0.0
        %1043 = vmatprep.subr.mxu0 0.0
        %1044 = vmatpush2.msra.mxu0 0.0
        %1045 = vmatprep.subr.mxu0 0.0
        %1046 = vmatpush2.msra.mxu0 0.0
        %1047 = vmatprep.subr.mxu0 0.0
        %1048 = vmatpush2.msra.mxu0 0.0
        %1049 = vmatprep.subr.mxu0 0.0
        %1050 = vmatpush2.msra.mxu0 0.0
        %1051 = vmatprep.subr.mxu0 0.0
        %1052 = vmatpush2.msra.mxu0 0.0
        %1053 = vmatprep.mubr.f32.mxu0 0.0
        %1054 = vmatmul.mubr.f32.gmra.mxu0 %v891
        %v1055 = vpop.f32.mrf.mxu0
        %v1056 = vadd.f32 %v887, %v1055
        %v1057 = vpop.f32.mrf.mxu0
        %v1058 = vadd.f32 %v887, %v1057
        %1059 = vdwg.mxu0
        %1060 = vmatprep.subr.mxu0 0.0
        %1061 = vmatpush1.msra.mxu0 0.0
        %1062 = vmatprep.subr.mxu0 0.0
        %1063 = vmatpush1.msra.mxu0 0.0
        %1064 = vmatprep.subr.mxu0 0.0
        %1065 = vmatpush1.msra.mxu0 0.0
        %1066 = vmatprep.subr.mxu0 0.0
        %1067 = vmatpush1.msra.mxu0 0.0
        %1068 = vmatprep.subr.mxu0 0.0
        %1069 = vmatpush1.msra.mxu0 0.0
        %1070 = vmatprep.subr.mxu0 0.0
        %1071 = vmatpush1.msra.mxu0 0.0
        %1072 = vmatprep.subr.mxu0 0.0
        %1073 = vmatpush1.msra.mxu0 0.0
        %1074 = vmatprep.subr.mxu0 0.0
        %1075 = vmatpush1.msra.mxu0 0.0
        %1076 = vmatprep.subr.mxu0 0.0
        %1077 = vmatpush1.msra.mxu0 0.0
        %1078 = vmatprep.subr.mxu0 0.0
        %1079 = vmatpush1.msra.mxu0 0.0
        %1080 = vmatprep.subr.mxu0 0.0
        %1081 = vmatpush1.msra.mxu0 0.0
        %1082 = vmatprep.subr.mxu0 0.0
        %1083 = vmatpush1.msra.mxu0 0.0
        %1084 = vmatprep.subr.mxu0 0.0
        %1085 = vmatpush1.msra.mxu0 0.0
        %1086 = vmatprep.subr.mxu0 0.0
        %1087 = vmatpush1.msra.mxu0 0.0
        %1088 = vmatprep.subr.mxu0 0.0
        %1089 = vmatpush1.msra.mxu0 0.0
        %1090 = vmatprep.subr.mxu0 %v910
        %1091 = vmatpush1.msra.mxu0 %v907
        %1092 = vmatprep.subr.mxu0 0.0
        %1093 = vmatpush2.msra.mxu0 0.0
        %1094 = vmatprep.subr.mxu0 0.0
        %1095 = vmatpush2.msra.mxu0 0.0
        %1096 = vmatprep.subr.mxu0 0.0
        %1097 = vmatpush2.msra.mxu0 0.0
        %1098 = vmatprep.subr.mxu0 0.0
        %1099 = vmatpush2.msra.mxu0 0.0
        %1100 = vmatprep.subr.mxu0 0.0
        %1101 = vmatpush2.msra.mxu0 0.0
        %1102 = vmatprep.subr.mxu0 0.0
        %1103 = vmatpush2.msra.mxu0 0.0
        %1104 = vmatprep.subr.mxu0 0.0
        %1105 = vmatpush2.msra.mxu0 0.0
        %1106 = vmatprep.subr.mxu0 0.0
        %1107 = vmatpush2.msra.mxu0 0.0
        %1108 = vmatprep.subr.mxu0 0.0
        %1109 = vmatpush2.msra.mxu0 0.0
        %1110 = vmatprep.subr.mxu0 0.0
        %1111 = vmatpush2.msra.mxu0 0.0
        %1112 = vmatprep.subr.mxu0 0.0
        %1113 = vmatpush2.msra.mxu0 0.0
        %1114 = vmatprep.subr.mxu0 0.0
        %1115 = vmatpush2.msra.mxu0 0.0
        %1116 = vmatprep.subr.mxu0 0.0
        %1117 = vmatpush2.msra.mxu0 0.0
        %1118 = vmatprep.subr.mxu0 0.0
        %1119 = vmatpush2.msra.mxu0 0.0
        %1120 = vmatprep.subr.mxu0 0.0
        %1121 = vmatpush2.msra.mxu0 0.0
        %1122 = vmatprep.subr.mxu0 0.0
        %1123 = vmatpush2.msra.mxu0 0.0
        %1124 = vmatprep.mubr.f32.mxu0 0.0
        %1125 = vmatmul.mubr.f32.gmra.mxu0 %v891
        %v1126 = vpop.f32.mrf.mxu0
        %v1127 = vadd.f32 %v887, %v1126
        %v1128 = vpop.f32.mrf.mxu0
        %v1129 = vadd.f32 %v887, %v1128
        %1130 = vdwg.mxu0
        %1131 = vmatprep.subr.mxu0 0.0
        %1132 = vmatpush1.msra.mxu0 0.0
        %1133 = vmatprep.subr.mxu0 0.0
        %1134 = vmatpush1.msra.mxu0 0.0
        %1135 = vmatprep.subr.mxu0 0.0
        %1136 = vmatpush1.msra.mxu0 0.0
        %1137 = vmatprep.subr.mxu0 0.0
        %1138 = vmatpush1.msra.mxu0 0.0
        %1139 = vmatprep.subr.mxu0 0.0
        %1140 = vmatpush1.msra.mxu0 0.0
        %1141 = vmatprep.subr.mxu0 0.0
        %1142 = vmatpush1.msra.mxu0 0.0
        %1143 = vmatprep.subr.mxu0 0.0
        %1144 = vmatpush1.msra.mxu0 0.0
        %1145 = vmatprep.subr.mxu0 0.0
        %1146 = vmatpush1.msra.mxu0 0.0
        %1147 = vmatprep.subr.mxu0 0.0
        %1148 = vmatpush1.msra.mxu0 0.0
        %1149 = vmatprep.subr.mxu0 0.0
        %1150 = vmatpush1.msra.mxu0 0.0
        %1151 = vmatprep.subr.mxu0 0.0
        %1152 = vmatpush1.msra.mxu0 0.0
        %1153 = vmatprep.subr.mxu0 0.0
        %1154 = vmatpush1.msra.mxu0 0.0
        %1155 = vmatprep.subr.mxu0 0.0
        %1156 = vmatpush1.msra.mxu0 0.0
        %1157 = vmatprep.subr.mxu0 0.0
        %1158 = vmatpush1.msra.mxu0 0.0
        %1159 = vmatprep.subr.mxu0 0.0
        %1160 = vmatpush1.msra.mxu0 0.0
        %1161 = vmatprep.subr.mxu0 %v916
        %1162 = vmatpush1.msra.mxu0 %v913
        %1163 = vmatprep.subr.mxu0 0.0
        %1164 = vmatpush2.msra.mxu0 0.0
        %1165 = vmatprep.subr.mxu0 0.0
        %1166 = vmatpush2.msra.mxu0 0.0
        %1167 = vmatprep.subr.mxu0 0.0
        %1168 = vmatpush2.msra.mxu0 0.0
        %1169 = vmatprep.subr.mxu0 0.0
        %1170 = vmatpush2.msra.mxu0 0.0
        %1171 = vmatprep.subr.mxu0 0.0
        %1172 = vmatpush2.msra.mxu0 0.0
        %1173 = vmatprep.subr.mxu0 0.0
        %1174 = vmatpush2.msra.mxu0 0.0
        %1175 = vmatprep.subr.mxu0 0.0
        %1176 = vmatpush2.msra.mxu0 0.0
        %1177 = vmatprep.subr.mxu0 0.0
        %1178 = vmatpush2.msra.mxu0 0.0
        %1179 = vmatprep.subr.mxu0 0.0
        %1180 = vmatpush2.msra.mxu0 0.0
        %1181 = vmatprep.subr.mxu0 0.0
        %1182 = vmatpush2.msra.mxu0 0.0
        %1183 = vmatprep.subr.mxu0 0.0
        %1184 = vmatpush2.msra.mxu0 0.0
        %1185 = vmatprep.subr.mxu0 0.0
        %1186 = vmatpush2.msra.mxu0 0.0
        %1187 = vmatprep.subr.mxu0 0.0
        %1188 = vmatpush2.msra.mxu0 0.0
        %1189 = vmatprep.subr.mxu0 0.0
        %1190 = vmatpush2.msra.mxu0 0.0
        %1191 = vmatprep.subr.mxu0 0.0
        %1192 = vmatpush2.msra.mxu0 0.0
        %1193 = vmatprep.subr.mxu0 0.0
        %1194 = vmatpush2.msra.mxu0 0.0
        %1195 = vmatprep.mubr.f32.mxu0 0.0
        %1196 = vmatmul.mubr.f32.gmra.mxu0 %v891
        %v1197 = vpop.f32.mrf.mxu0
        %v1198 = vadd.f32 %v887, %v1197
        %v1199 = vpop.f32.mrf.mxu0
        %v1200 = vadd.f32 %v887, %v1199
        %1201 = vdwg.mxu0
        %v1210 = vcombine.low %v985, %v987
        %v1211 = vcombine.low %v1056, %v1058
        %v1212 = vcombine.low %v1127, %v1129
        %v1213 = vcombine.low %v1198, %v1200
        %1218 = vst [vmem:[%s215] sm:$0x77] %v1210
        %1219 = vst [vmem:[%s215 + $0x8] sm:$0x77] %v1211
        %1220 = vst [vmem:[%s215 + $0x10] sm:$0x77] %v1212
        %1221 = vst [vmem:[%s215 + $0x18] sm:$0x77] %v1213
        %s1222 = sand.u32 %s118, 1
        %s1223 = scalar_lea.sflag [#allocation4], %s1222
        %s1224 = sand.u32 %s118, 1
        %s1225 = smul.addr %s1224, 32
        %s1226 = scalar_lea.vmem [#allocation5], %s1225
        // Predicated region
        $region41: #{bfm_forward.1} parent=35 // pred_check
          %p1227 = pneg %p128
        $region42: #{bfm_forward.1} parent=35 // pred_check_branch
          %1229 = sbr.rel (%p1227) target = $region44
        $region43: #{bfm_forward.1} parent=35 // pred_region
          %s1230 = smul.u32 8, %s21
          %s1231 = ssub.s32 20, %s1230
          %p1232 = scmp.lt.s32.totalorder %s1231, 8
          %s1233 = scalar_select %p1232, %s1231, 8
          %s1234 = smul.u32 64, %s1233
          %s1236 = ssub.s32 512, %s1234
          %1237 = vsyncadd %s1223, %s1236
          %p1238 = scmp.ne.s32.totalorder 0, %s1234
          %s1239 = smul.addr %s1230, 64
          %s1240 = scalar_lea.hbm %s4, %s1239
          %s1241 = smul.u32 %s1233, 4
          %s1242 = sshll.u32 %s1241, 4
          %s1243 = sshll.u32 %s1226, 4
          %s1244 = int_to_ptr.vmem [resolvable:$true] %s1243
          %1246 = dma.vmem_to_hbm [thread:$0]  (%p1238), %s1244, %s1242, %s1240, %s1223
        $region44: #{bfm_forward.1} parent=35 // pred_fallthru
          _
      $region36: #{bfm_forward.1} parent=5 // pred_fallthru
        _
      %p1247 = scmp.le.s32.totalorder 2, %s16
      // Predicated region
      $region45: #{bfm_forward.1} parent=5 // pred_check
        %p1248 = pneg %p1247
      $region46: #{bfm_forward.1} parent=5 // pred_check_branch
        %1250 = sbr.rel (%p1248) target = $region48
      $region47: #{bfm_forward.1} parent=5 // pred_region
        %s1251 = ssub.s32 %s16, 2
        // Predicated region
        $region49: #{bfm_forward.1} parent=47 // pred_check
          %p1252 = pneg %p134
        $region50: #{bfm_forward.1} parent=47 // pred_check_branch
          %1254 = sbr.rel (%p1252) target = $region52
        $region51: #{bfm_forward.1} parent=47 // pred_region
          %s1255 = sand.u32 %s119, 1
          %s1256 = scalar_lea.sflag [#allocation4], %s1255
          %s1257 = sand.u32 %s119, 1
          %s1258 = smul.addr %s1257, 32
          %s1259 = scalar_lea.vmem [#allocation5], %s1258
          %1260 = dma.done %s1256, 512
        $region52: #{bfm_forward.1} parent=47 // pred_fallthru
          _
      $region48: #{bfm_forward.1} parent=5 // pred_fallthru
        _
    $region6: #{bfm_forward.1} parent=1 // loop_footer
      %s20 = sadd.s32 1, %s16
    $region7: #{bfm_forward.1} parent=1 // loop_footer_branch
      %15 = sbr.rel target = $region3
    $region8: #{bfm_forward.1} parent=1 // loop_exit
      _
    %1261 = vsyncpa [#allocation3], 1
    %s1262 = scalar_lea.sflag [#allocation3], 1
    %1263 = vsyncpa %s1262, 1
    %1264 = vsyncpa [#allocation4], 1
    %s1265 = scalar_lea.sflag [#allocation4], 1
    %1266 = vsyncpa %s1265, 1

</llo_original>
